<compile_context>
chip_gen: v5e
topology: v5e:2x2
jax: 0.10.0
libtpu: 0.0.40
codegen_flags: <defaults>
</compile_context>

<pallas_src>
import jax
import jax.numpy as jnp
from jax.experimental import pallas as pl
from jax.experimental.pallas import tpu as pltpu

# ----------------------------- small config ----------------------------------
B = 8            # batch
IN = 16          # input_dim
HID = 32         # hidden_dim
OUT = 4          # output_dim
NUM_LAYERS = 6   # num_layers
OUT_PAD = 128    # lane-dense padded output width (sliced back to OUT in wrapper)
EPS = 1e-5       # nn.LayerNorm default eps


# ----------------------------- in-kernel helpers ------------------------------
def _standardize(x):
    """One-pass LayerNorm statistics (affine folded into the next Linear)."""
    d = x.shape[-1]
    s = jnp.sum(x, axis=-1, keepdims=True)
    s2 = jnp.sum(x * x, axis=-1, keepdims=True)
    mu = s * (1.0 / d)
    var = s2 * (1.0 / d) - mu * mu
    return (x - mu) * jax.lax.rsqrt(var + EPS)


def _mm(a, b):
    return jnp.dot(a, b, preferred_element_type=jnp.float32)


# --------------------------------- kernel -------------------------------------
def fused_mlp_kernel(x_ref, l0_ref, wl_ref, fc_ref, out_ref):
    """Whole CustomDeeperModel forward in one kernel.

    x_ref   : (B, IN)
    l0_ref  : (IN+1, HID)          rows [0:IN]  = folded W0', row IN  = b0'
    wl_ref  : (L-1, HID+1, HID)    rows [0:HID] = folded W',  row HID = b'
    fc_ref  : (HID+1, OUT_PAD)     rows [0:HID] = Wfc, row HID = bfc (zero-pad)
    out_ref : (B, OUT_PAD)
    """
    x = x_ref[...]                                             # (B, IN)

    # ---- layer 0: standardize(IN) -> (folded) Linear(IN, HID) -> ReLU ----
    h = _standardize(x)
    h = jnp.maximum(_mm(h, l0_ref[0:IN, :]) + l0_ref[IN:IN + 1, :], 0.0)

    # ---- layers 1..L-1: standardize(HID) -> (folded) Linear(HID, HID) -> ReLU
    # Static unroll (L-1 = 5 iterations); weight slab indexed statically.
    for i in range(NUM_LAYERS - 1):
        wb = wl_ref[i]                                         # (HID+1, HID)
        h = _standardize(h)
        h = jnp.maximum(_mm(h, wb[0:HID, :]) + wb[HID:HID + 1, :], 0.0)
    # Dropout layers are identity in inference/eval mode (omitted).

    # ---- fc head (lane-dense padded store) ----
    out_ref[...] = _mm(h, fc_ref[0:HID, :]) + fc_ref[HID:HID + 1, :]


# ------------------------------ wrapper ---------------------------------------
@jax.jit
def custom_deeper_forward(x, packed):
    out_pad = pl.pallas_call(
        fused_mlp_kernel,
        out_shape=jax.ShapeDtypeStruct((x.shape[0], OUT_PAD), jnp.float32),
        in_specs=[pl.BlockSpec(memory_space=pltpu.MemorySpace.VMEM)] * 4,
        out_specs=pl.BlockSpec(memory_space=pltpu.MemorySpace.VMEM),
    )(x, packed["l0"], packed["wl"], packed["fc"])
    # Standalone use: slice the lane-padded columns back to output_dim.
    return out_pad[:, :OUT]


# ------------------------------ params ----------------------------------------
def init_raw_params(key):
    """PyTorch-style per-layer params: (gamma, beta, W(in,out), b)."""
    ks = iter(jax.random.split(key, 64))
    nxt = lambda: next(ks)

    def lin(fan_in, fan_out):
        bound = 1.0 / jnp.sqrt(jnp.float32(fan_in))
        W = jax.random.uniform(nxt(), (fan_in, fan_out), jnp.float32, -bound, bound)
        b = jax.random.uniform(nxt(), (fan_out,), jnp.float32, -bound, bound)
        return W, b

    layers = []
    d_in = IN
    for _ in range(NUM_LAYERS):
        # Non-trivial gamma/beta so the affine-folding path is actually exercised.
        gamma = 1.0 + 0.1 * jax.random.normal(nxt(), (d_in,), jnp.float32)
        beta = 0.1 * jax.random.normal(nxt(), (d_in,), jnp.float32)
        W, b = lin(d_in, HID)
        layers.append((gamma, beta, W, b))
        d_in = HID
    Wfc, bfc = lin(HID, OUT)
    return {"layers": layers, "fc": (Wfc, bfc)}


def pack_params(raw):
    """Fold LN affine into the following Linear and pack into 3 slabs."""
    def fold(gamma, beta, W, b):
        Wf = gamma[:, None] * W            # diag(gamma) @ W
        bf = beta @ W + b                  # beta @ W + b
        return Wf, bf

    # layer 0 slab: (IN+1, HID)
    g, bt, W, b = raw["layers"][0]
    Wf, bf = fold(g, bt, W, b)
    l0 = jnp.concatenate([Wf, bf[None, :]], axis=0)

    # layers 1..L-1 slab: (L-1, HID+1, HID)
    slabs = []
    for (g, bt, W, b) in raw["layers"][1:]:
        Wf, bf = fold(g, bt, W, b)
        slabs.append(jnp.concatenate([Wf, bf[None, :]], axis=0))
    wl = jnp.stack(slabs)

    # fc slab: (HID+1, OUT_PAD), zero-padded beyond OUT for lane-dense stores
    Wfc, bfc = raw["fc"]
    fc = jnp.zeros((HID + 1, OUT_PAD), jnp.float32)
    fc = fc.at[:HID, :OUT].set(Wfc)
    fc = fc.at[HID, :OUT].set(bfc)

    return {"l0": l0, "wl": wl, "fc": fc}


# ------------------------------ reference -------------------------------------
def reference_forward(x, raw):
    """Pure-JAX reference matching the PyTorch forward (eval mode), unfolded."""
    h = x
    for (gamma, beta, W, b) in raw["layers"]:
        mu = jnp.mean(h, axis=-1, keepdims=True)
        var = jnp.mean(jnp.square(h - mu), axis=-1, keepdims=True)
        h = (h - mu) / jnp.sqrt(var + EPS) * gamma + beta
        h = jnp.maximum(h @ W + b, 0.0)
    Wfc, bfc = raw["fc"]
    return h @ Wfc + bfc


# --------------------------------- main ----------------------------------------
if __name__ == "__main__":
    x = jax.random.normal(jax.random.PRNGKey(0), (B, IN), jnp.float32)
    raw = init_raw_params(jax.random.PRNGKey(1))
    packed = pack_params(raw)

    out = custom_deeper_forward(x, packed)
    out = jax.block_until_ready(out)

    assert out.shape == (B, OUT), out.shape
    assert bool(jnp.all(jnp.isfinite(out)))

    ref = reference_forward(x, raw)
    assert bool(jnp.allclose(out, ref, atol=1e-4, rtol=1e-4)), (
        float(jnp.max(jnp.abs(out - ref))))

    print("KERNEL_OK")
</pallas_src>

<mosaic_0001>
module attributes {stable_mosaic.version = 11 : i64} {
  func.func @fused_mlp_kernel(%arg0: memref<8x16xf32, #tpu.memory_space<vmem>>, %arg1: memref<17x32xf32, #tpu.memory_space<vmem>>, %arg2: memref<5x33x32xf32, #tpu.memory_space<vmem>>, %arg3: memref<33x128xf32, #tpu.memory_space<vmem>>, %arg4: memref<8x128xf32, #tpu.memory_space<vmem>>) attributes {dimension_semantics = [], scalar_prefetch = 0 : i64, scratch_operands = 0 : i64, tpu.core_type = #tpu.core_type<tc>} {
    %c0 = arith.constant 0 : index
    %c0_0 = arith.constant 0 : index
    %0 = vector.load %arg0[%c0, %c0_0] : memref<8x16xf32, #tpu.memory_space<vmem>>, vector<8x16xf32>
    %cst = arith.constant dense<0.000000e+00> : vector<8xf32>
    %1 = vector.multi_reduction <add>, %0, %cst [1] : vector<8x16xf32> to vector<8xf32>
    %2 = vector.shape_cast %1 : vector<8xf32> to vector<8x1xf32>
    %3 = arith.mulf %0, %0 : vector<8x16xf32>
    %cst_1 = arith.constant dense<0.000000e+00> : vector<8xf32>
    %4 = vector.multi_reduction <add>, %3, %cst_1 [1] : vector<8x16xf32> to vector<8xf32>
    %5 = vector.shape_cast %4 : vector<8xf32> to vector<8x1xf32>
    %cst_2 = arith.constant 6.250000e-02 : f32
    %6 = vector.broadcast %cst_2 : f32 to vector<8x1xf32>
    %7 = arith.mulf %2, %6 : vector<8x1xf32>
    %cst_3 = arith.constant 6.250000e-02 : f32
    %8 = vector.broadcast %cst_3 : f32 to vector<8x1xf32>
    %9 = arith.mulf %5, %8 : vector<8x1xf32>
    %10 = arith.mulf %7, %7 : vector<8x1xf32>
    %11 = arith.subf %9, %10 : vector<8x1xf32>
    %12 = vector.broadcast %7 : vector<8x1xf32> to vector<8x16xf32>
    %13 = arith.subf %0, %12 : vector<8x16xf32>
    %cst_4 = arith.constant 9.99999974E-6 : f32
    %14 = vector.broadcast %cst_4 : f32 to vector<8x1xf32>
    %15 = arith.addf %11, %14 : vector<8x1xf32>
    %16 = math.rsqrt %15 : vector<8x1xf32>
    %17 = vector.broadcast %16 : vector<8x1xf32> to vector<8x16xf32>
    %18 = arith.mulf %13, %17 : vector<8x16xf32>
    %c0_5 = arith.constant 0 : index
    %c0_6 = arith.constant 0 : index
    %19 = vector.load %arg1[%c0_5, %c0_6] : memref<17x32xf32, #tpu.memory_space<vmem>>, vector<16x32xf32>
    %cst_7 = arith.constant dense<0.000000e+00> : vector<8x32xf32>
    %20 = tpu.matmul %18, %19, %cst_7 {dimension_numbers = #tpu.dot_dimension_numbers<[1], [0], [0], [1], [0, 0, 1, 1], [], []>} : vector<8x16xf32>, vector<16x32xf32>, vector<8x32xf32> -> vector<8x32xf32>
    %c16 = arith.constant 16 : index
    %c0_8 = arith.constant 0 : index
    %21 = vector.load %arg1[%c16, %c0_8] : memref<17x32xf32, #tpu.memory_space<vmem>>, vector<1x32xf32>
    %22 = vector.broadcast %21 : vector<1x32xf32> to vector<8x32xf32>
    %23 = arith.addf %20, %22 : vector<8x32xf32>
    %cst_9 = arith.constant 0.000000e+00 : f32
    %24 = vector.broadcast %cst_9 : f32 to vector<8x32xf32>
    %25 = arith.maximumf %23, %24 : vector<8x32xf32>
    %c0_10 = arith.constant 0 : index
    %c0_11 = arith.constant 0 : index
    %c0_12 = arith.constant 0 : index
    %26 = vector.load %arg2[%c0_10, %c0_11, %c0_12] : memref<5x33x32xf32, #tpu.memory_space<vmem>>, vector<1x33x32xf32>
    %27 = vector.shape_cast %26 : vector<1x33x32xf32> to vector<33x32xf32>
    %cst_13 = arith.constant dense<0.000000e+00> : vector<8xf32>
    %28 = vector.multi_reduction <add>, %25, %cst_13 [1] : vector<8x32xf32> to vector<8xf32>
    %29 = vector.shape_cast %28 : vector<8xf32> to vector<8x1xf32>
    %30 = arith.mulf %25, %25 : vector<8x32xf32>
    %cst_14 = arith.constant dense<0.000000e+00> : vector<8xf32>
    %31 = vector.multi_reduction <add>, %30, %cst_14 [1] : vector<8x32xf32> to vector<8xf32>
    %32 = vector.shape_cast %31 : vector<8xf32> to vector<8x1xf32>
    %cst_15 = arith.constant 3.125000e-02 : f32
    %33 = vector.broadcast %cst_15 : f32 to vector<8x1xf32>
    %34 = arith.mulf %29, %33 : vector<8x1xf32>
    %cst_16 = arith.constant 3.125000e-02 : f32
    %35 = vector.broadcast %cst_16 : f32 to vector<8x1xf32>
    %36 = arith.mulf %32, %35 : vector<8x1xf32>
    %37 = arith.mulf %34, %34 : vector<8x1xf32>
    %38 = arith.subf %36, %37 : vector<8x1xf32>
    %39 = vector.broadcast %34 : vector<8x1xf32> to vector<8x32xf32>
    %40 = arith.subf %25, %39 : vector<8x32xf32>
    %cst_17 = arith.constant 9.99999974E-6 : f32
    %41 = vector.broadcast %cst_17 : f32 to vector<8x1xf32>
    %42 = arith.addf %38, %41 : vector<8x1xf32>
    %43 = math.rsqrt %42 : vector<8x1xf32>
    %44 = vector.broadcast %43 : vector<8x1xf32> to vector<8x32xf32>
    %45 = arith.mulf %40, %44 : vector<8x32xf32>
    %46 = vector.extract_strided_slice %27 {offsets = [0, 0], sizes = [32, 32], strides = [1, 1]} : vector<33x32xf32> to vector<32x32xf32>
    %cst_18 = arith.constant dense<0.000000e+00> : vector<8x32xf32>
    %47 = tpu.matmul %45, %46, %cst_18 {dimension_numbers = #tpu.dot_dimension_numbers<[1], [0], [0], [1], [0, 0, 1, 1], [], []>} : vector<8x32xf32>, vector<32x32xf32>, vector<8x32xf32> -> vector<8x32xf32>
    %48 = vector.extract_strided_slice %27 {offsets = [32, 0], sizes = [1, 32], strides = [1, 1]} : vector<33x32xf32> to vector<1x32xf32>
    %49 = vector.broadcast %48 : vector<1x32xf32> to vector<8x32xf32>
    %50 = arith.addf %47, %49 : vector<8x32xf32>
    %cst_19 = arith.constant 0.000000e+00 : f32
    %51 = vector.broadcast %cst_19 : f32 to vector<8x32xf32>
    %52 = arith.maximumf %50, %51 : vector<8x32xf32>
    %c1 = arith.constant 1 : index
    %c0_20 = arith.constant 0 : index
    %c0_21 = arith.constant 0 : index
    %53 = vector.load %arg2[%c1, %c0_20, %c0_21] : memref<5x33x32xf32, #tpu.memory_space<vmem>>, vector<1x33x32xf32>
    %54 = vector.shape_cast %53 : vector<1x33x32xf32> to vector<33x32xf32>
    %cst_22 = arith.constant dense<0.000000e+00> : vector<8xf32>
    %55 = vector.multi_reduction <add>, %52, %cst_22 [1] : vector<8x32xf32> to vector<8xf32>
    %56 = vector.shape_cast %55 : vector<8xf32> to vector<8x1xf32>
    %57 = arith.mulf %52, %52 : vector<8x32xf32>
    %cst_23 = arith.constant dense<0.000000e+00> : vector<8xf32>
    %58 = vector.multi_reduction <add>, %57, %cst_23 [1] : vector<8x32xf32> to vector<8xf32>
    %59 = vector.shape_cast %58 : vector<8xf32> to vector<8x1xf32>
    %cst_24 = arith.constant 3.125000e-02 : f32
    %60 = vector.broadcast %cst_24 : f32 to vector<8x1xf32>
    %61 = arith.mulf %56, %60 : vector<8x1xf32>
    %cst_25 = arith.constant 3.125000e-02 : f32
    %62 = vector.broadcast %cst_25 : f32 to vector<8x1xf32>
    %63 = arith.mulf %59, %62 : vector<8x1xf32>
    %64 = arith.mulf %61, %61 : vector<8x1xf32>
    %65 = arith.subf %63, %64 : vector<8x1xf32>
    %66 = vector.broadcast %61 : vector<8x1xf32> to vector<8x32xf32>
    %67 = arith.subf %52, %66 : vector<8x32xf32>
    %cst_26 = arith.constant 9.99999974E-6 : f32
    %68 = vector.broadcast %cst_26 : f32 to vector<8x1xf32>
    %69 = arith.addf %65, %68 : vector<8x1xf32>
    %70 = math.rsqrt %69 : vector<8x1xf32>
    %71 = vector.broadcast %70 : vector<8x1xf32> to vector<8x32xf32>
    %72 = arith.mulf %67, %71 : vector<8x32xf32>
    %73 = vector.extract_strided_slice %54 {offsets = [0, 0], sizes = [32, 32], strides = [1, 1]} : vector<33x32xf32> to vector<32x32xf32>
    %cst_27 = arith.constant dense<0.000000e+00> : vector<8x32xf32>
    %74 = tpu.matmul %72, %73, %cst_27 {dimension_numbers = #tpu.dot_dimension_numbers<[1], [0], [0], [1], [0, 0, 1, 1], [], []>} : vector<8x32xf32>, vector<32x32xf32>, vector<8x32xf32> -> vector<8x32xf32>
    %75 = vector.extract_strided_slice %54 {offsets = [32, 0], sizes = [1, 32], strides = [1, 1]} : vector<33x32xf32> to vector<1x32xf32>
    %76 = vector.broadcast %75 : vector<1x32xf32> to vector<8x32xf32>
    %77 = arith.addf %74, %76 : vector<8x32xf32>
    %cst_28 = arith.constant 0.000000e+00 : f32
    %78 = vector.broadcast %cst_28 : f32 to vector<8x32xf32>
    %79 = arith.maximumf %77, %78 : vector<8x32xf32>
    %c2 = arith.constant 2 : index
    %c0_29 = arith.constant 0 : index
    %c0_30 = arith.constant 0 : index
    %80 = vector.load %arg2[%c2, %c0_29, %c0_30] : memref<5x33x32xf32, #tpu.memory_space<vmem>>, vector<1x33x32xf32>
    %81 = vector.shape_cast %80 : vector<1x33x32xf32> to vector<33x32xf32>
    %cst_31 = arith.constant dense<0.000000e+00> : vector<8xf32>
    %82 = vector.multi_reduction <add>, %79, %cst_31 [1] : vector<8x32xf32> to vector<8xf32>
    %83 = vector.shape_cast %82 : vector<8xf32> to vector<8x1xf32>
    %84 = arith.mulf %79, %79 : vector<8x32xf32>
    %cst_32 = arith.constant dense<0.000000e+00> : vector<8xf32>
    %85 = vector.multi_reduction <add>, %84, %cst_32 [1] : vector<8x32xf32> to vector<8xf32>
    %86 = vector.shape_cast %85 : vector<8xf32> to vector<8x1xf32>
    %cst_33 = arith.constant 3.125000e-02 : f32
    %87 = vector.broadcast %cst_33 : f32 to vector<8x1xf32>
    %88 = arith.mulf %83, %87 : vector<8x1xf32>
    %cst_34 = arith.constant 3.125000e-02 : f32
    %89 = vector.broadcast %cst_34 : f32 to vector<8x1xf32>
    %90 = arith.mulf %86, %89 : vector<8x1xf32>
    %91 = arith.mulf %88, %88 : vector<8x1xf32>
    %92 = arith.subf %90, %91 : vector<8x1xf32>
    %93 = vector.broadcast %88 : vector<8x1xf32> to vector<8x32xf32>
    %94 = arith.subf %79, %93 : vector<8x32xf32>
    %cst_35 = arith.constant 9.99999974E-6 : f32
    %95 = vector.broadcast %cst_35 : f32 to vector<8x1xf32>
    %96 = arith.addf %92, %95 : vector<8x1xf32>
    %97 = math.rsqrt %96 : vector<8x1xf32>
    %98 = vector.broadcast %97 : vector<8x1xf32> to vector<8x32xf32>
    %99 = arith.mulf %94, %98 : vector<8x32xf32>
    %100 = vector.extract_strided_slice %81 {offsets = [0, 0], sizes = [32, 32], strides = [1, 1]} : vector<33x32xf32> to vector<32x32xf32>
    %cst_36 = arith.constant dense<0.000000e+00> : vector<8x32xf32>
    %101 = tpu.matmul %99, %100, %cst_36 {dimension_numbers = #tpu.dot_dimension_numbers<[1], [0], [0], [1], [0, 0, 1, 1], [], []>} : vector<8x32xf32>, vector<32x32xf32>, vector<8x32xf32> -> vector<8x32xf32>
    %102 = vector.extract_strided_slice %81 {offsets = [32, 0], sizes = [1, 32], strides = [1, 1]} : vector<33x32xf32> to vector<1x32xf32>
    %103 = vector.broadcast %102 : vector<1x32xf32> to vector<8x32xf32>
    %104 = arith.addf %101, %103 : vector<8x32xf32>
    %cst_37 = arith.constant 0.000000e+00 : f32
    %105 = vector.broadcast %cst_37 : f32 to vector<8x32xf32>
    %106 = arith.maximumf %104, %105 : vector<8x32xf32>
    %c3 = arith.constant 3 : index
    %c0_38 = arith.constant 0 : index
    %c0_39 = arith.constant 0 : index
    %107 = vector.load %arg2[%c3, %c0_38, %c0_39] : memref<5x33x32xf32, #tpu.memory_space<vmem>>, vector<1x33x32xf32>
    %108 = vector.shape_cast %107 : vector<1x33x32xf32> to vector<33x32xf32>
    %cst_40 = arith.constant dense<0.000000e+00> : vector<8xf32>
    %109 = vector.multi_reduction <add>, %106, %cst_40 [1] : vector<8x32xf32> to vector<8xf32>
    %110 = vector.shape_cast %109 : vector<8xf32> to vector<8x1xf32>
    %111 = arith.mulf %106, %106 : vector<8x32xf32>
    %cst_41 = arith.constant dense<0.000000e+00> : vector<8xf32>
    %112 = vector.multi_reduction <add>, %111, %cst_41 [1] : vector<8x32xf32> to vector<8xf32>
    %113 = vector.shape_cast %112 : vector<8xf32> to vector<8x1xf32>
    %cst_42 = arith.constant 3.125000e-02 : f32
    %114 = vector.broadcast %cst_42 : f32 to vector<8x1xf32>
    %115 = arith.mulf %110, %114 : vector<8x1xf32>
    %cst_43 = arith.constant 3.125000e-02 : f32
    %116 = vector.broadcast %cst_43 : f32 to vector<8x1xf32>
    %117 = arith.mulf %113, %116 : vector<8x1xf32>
    %118 = arith.mulf %115, %115 : vector<8x1xf32>
    %119 = arith.subf %117, %118 : vector<8x1xf32>
    %120 = vector.broadcast %115 : vector<8x1xf32> to vector<8x32xf32>
    %121 = arith.subf %106, %120 : vector<8x32xf32>
    %cst_44 = arith.constant 9.99999974E-6 : f32
    %122 = vector.broadcast %cst_44 : f32 to vector<8x1xf32>
    %123 = arith.addf %119, %122 : vector<8x1xf32>
    %124 = math.rsqrt %123 : vector<8x1xf32>
    %125 = vector.broadcast %124 : vector<8x1xf32> to vector<8x32xf32>
    %126 = arith.mulf %121, %125 : vector<8x32xf32>
    %127 = vector.extract_strided_slice %108 {offsets = [0, 0], sizes = [32, 32], strides = [1, 1]} : vector<33x32xf32> to vector<32x32xf32>
    %cst_45 = arith.constant dense<0.000000e+00> : vector<8x32xf32>
    %128 = tpu.matmul %126, %127, %cst_45 {dimension_numbers = #tpu.dot_dimension_numbers<[1], [0], [0], [1], [0, 0, 1, 1], [], []>} : vector<8x32xf32>, vector<32x32xf32>, vector<8x32xf32> -> vector<8x32xf32>
    %129 = vector.extract_strided_slice %108 {offsets = [32, 0], sizes = [1, 32], strides = [1, 1]} : vector<33x32xf32> to vector<1x32xf32>
    %130 = vector.broadcast %129 : vector<1x32xf32> to vector<8x32xf32>
    %131 = arith.addf %128, %130 : vector<8x32xf32>
    %cst_46 = arith.constant 0.000000e+00 : f32
    %132 = vector.broadcast %cst_46 : f32 to vector<8x32xf32>
    %133 = arith.maximumf %131, %132 : vector<8x32xf32>
    %c4 = arith.constant 4 : index
    %c0_47 = arith.constant 0 : index
    %c0_48 = arith.constant 0 : index
    %134 = vector.load %arg2[%c4, %c0_47, %c0_48] : memref<5x33x32xf32, #tpu.memory_space<vmem>>, vector<1x33x32xf32>
    %135 = vector.shape_cast %134 : vector<1x33x32xf32> to vector<33x32xf32>
    %cst_49 = arith.constant dense<0.000000e+00> : vector<8xf32>
    %136 = vector.multi_reduction <add>, %133, %cst_49 [1] : vector<8x32xf32> to vector<8xf32>
    %137 = vector.shape_cast %136 : vector<8xf32> to vector<8x1xf32>
    %138 = arith.mulf %133, %133 : vector<8x32xf32>
    %cst_50 = arith.constant dense<0.000000e+00> : vector<8xf32>
    %139 = vector.multi_reduction <add>, %138, %cst_50 [1] : vector<8x32xf32> to vector<8xf32>
    %140 = vector.shape_cast %139 : vector<8xf32> to vector<8x1xf32>
    %cst_51 = arith.constant 3.125000e-02 : f32
    %141 = vector.broadcast %cst_51 : f32 to vector<8x1xf32>
    %142 = arith.mulf %137, %141 : vector<8x1xf32>
    %cst_52 = arith.constant 3.125000e-02 : f32
    %143 = vector.broadcast %cst_52 : f32 to vector<8x1xf32>
    %144 = arith.mulf %140, %143 : vector<8x1xf32>
    %145 = arith.mulf %142, %142 : vector<8x1xf32>
    %146 = arith.subf %144, %145 : vector<8x1xf32>
    %147 = vector.broadcast %142 : vector<8x1xf32> to vector<8x32xf32>
    %148 = arith.subf %133, %147 : vector<8x32xf32>
    %cst_53 = arith.constant 9.99999974E-6 : f32
    %149 = vector.broadcast %cst_53 : f32 to vector<8x1xf32>
    %150 = arith.addf %146, %149 : vector<8x1xf32>
    %151 = math.rsqrt %150 : vector<8x1xf32>
    %152 = vector.broadcast %151 : vector<8x1xf32> to vector<8x32xf32>
    %153 = arith.mulf %148, %152 : vector<8x32xf32>
    %154 = vector.extract_strided_slice %135 {offsets = [0, 0], sizes = [32, 32], strides = [1, 1]} : vector<33x32xf32> to vector<32x32xf32>
    %cst_54 = arith.constant dense<0.000000e+00> : vector<8x32xf32>
    %155 = tpu.matmul %153, %154, %cst_54 {dimension_numbers = #tpu.dot_dimension_numbers<[1], [0], [0], [1], [0, 0, 1, 1], [], []>} : vector<8x32xf32>, vector<32x32xf32>, vector<8x32xf32> -> vector<8x32xf32>
    %156 = vector.extract_strided_slice %135 {offsets = [32, 0], sizes = [1, 32], strides = [1, 1]} : vector<33x32xf32> to vector<1x32xf32>
    %157 = vector.broadcast %156 : vector<1x32xf32> to vector<8x32xf32>
    %158 = arith.addf %155, %157 : vector<8x32xf32>
    %cst_55 = arith.constant 0.000000e+00 : f32
    %159 = vector.broadcast %cst_55 : f32 to vector<8x32xf32>
    %160 = arith.maximumf %158, %159 : vector<8x32xf32>
    %c0_56 = arith.constant 0 : index
    %c0_57 = arith.constant 0 : index
    %161 = vector.load %arg3[%c0_56, %c0_57] : memref<33x128xf32, #tpu.memory_space<vmem>>, vector<32x128xf32>
    %cst_58 = arith.constant dense<0.000000e+00> : vector<8x128xf32>
    %162 = tpu.matmul %160, %161, %cst_58 {dimension_numbers = #tpu.dot_dimension_numbers<[1], [0], [0], [1], [0, 0, 1, 1], [], []>} : vector<8x32xf32>, vector<32x128xf32>, vector<8x128xf32> -> vector<8x128xf32>
    %c32 = arith.constant 32 : index
    %c0_59 = arith.constant 0 : index
    %163 = vector.load %arg3[%c32, %c0_59] : memref<33x128xf32, #tpu.memory_space<vmem>>, vector<1x128xf32>
    %164 = vector.broadcast %163 : vector<1x128xf32> to vector<8x128xf32>
    %165 = arith.addf %162, %164 : vector<8x128xf32>
    %c0_60 = arith.constant 0 : index
    %c0_61 = arith.constant 0 : index
    %166 = vector.load %arg4[%c0_60, %c0_61] : memref<8x128xf32, #tpu.memory_space<vmem>>, vector<8x128xf32>
    tpu.vector_store %arg4[%c0_60, %c0_61], %165 {strides = array<i32>} : memref<8x128xf32, #tpu.memory_space<vmem>>, vector<8x128xf32>,
    return
  }
}

</mosaic_0001>

<llo_original>
// kernel: custom_deeper_forward.1
$region0: #{custom_deeper_forward.1}
  #allocation0 [shape = 'u32[]', space=smem, size = 0x4, offset = 0x4, fixed_abs, tag = 'smem constant byte address 0x4 - core index']
  #allocation1 [shape = 'u32[72,128]{1,0:T(1,128)}', space=vmem, size = 0x9000, scoped, tag = 'internal scratch']
  %s0 = inlined_call_operand.vmem [shape: f32[8,16], index: 0, kind: input, shape index: {}]
  %s1 = inlined_call_operand.vmem [shape: f32[17,32], index: 1, kind: input, shape index: {}]
  %s2 = inlined_call_operand.vmem [shape: f32[5,33,32], index: 2, kind: input, shape index: {}]
  %s3 = inlined_call_operand.vmem [shape: f32[33,128], index: 3, kind: input, shape index: {}]
  %s4 = inlined_call_operand.vmem [shape: f32[8,128], index: 4, kind: output, shape index: {}]
  %s5 = sld [smem:[#allocation0]]
  $region26: #{custom_deeper_forward.1} parent=0
    _
  %s7 = ssub.s32 1, %s5
  %s8 = scalar_select 0, %s7, %s5
  // Predicated region
  $region2: #{custom_deeper_forward.1} parent=0 // pred_check
    _
  $region3: #{custom_deeper_forward.1} parent=0 // pred_check_branch
    %10 = sbr.rel (0) target = $region5
  $region4: #{custom_deeper_forward.1} parent=0 // pred_region
    _
  $region5: #{custom_deeper_forward.1} parent=0 // pred_fallthru
    _
  // Predicated region
  $region6: #{custom_deeper_forward.1} parent=0 // pred_check
    _
  $region7: #{custom_deeper_forward.1} parent=0 // pred_check_branch
    %12 = sbr.rel (0) target = $region9
  $region8: #{custom_deeper_forward.1} parent=0 // pred_region
    _
  $region9: #{custom_deeper_forward.1} parent=0 // pred_fallthru
    _
  // Predicated region
  $region10: #{custom_deeper_forward.1} parent=0 // pred_check
    _
  $region11: #{custom_deeper_forward.1} parent=0 // pred_check_branch
    %14 = sbr.rel (0) target = $region13
  $region12: #{custom_deeper_forward.1} parent=0 // pred_region
    _
  $region13: #{custom_deeper_forward.1} parent=0 // pred_fallthru
    _
  // Predicated region
  $region14: #{custom_deeper_forward.1} parent=0 // pred_check
    _
  $region15: #{custom_deeper_forward.1} parent=0 // pred_check_branch
    %16 = sbr.rel (0) target = $region17
  $region16: #{custom_deeper_forward.1} parent=0 // pred_region
    _
  $region17: #{custom_deeper_forward.1} parent=0 // pred_fallthru
    _
  %v17 = vld [vmem:[%s0] sm:$0xff]
  %vm18 = vcmask 130048
  %v19 = vsel %vm18, %v17, 0.0
  %20 = vadd.xlane.f32.xlu0 %v19
  %v21 = vpop.xlane.xlu0 %20
  %v22 = vmul.f32 %v17, %v17
  %v23 = vsel %vm18, %v22, 0.0
  %24 = vadd.xlane.f32.xlu0 %v23
  %v25 = vpop.xlane.xlu0 %24
  %v26 = vmul.f32 %v21, 0.0625
  %v27 = vmul.f32 %v25, 0.0625
  %v28 = vmul.f32 %v26, %v26
  %v29 = vsub.f32 %v27, %v28
  %v30 = vsub.f32 %v17, %v26
  %v31 = vadd.f32 %v29, 1e-05
  %v32 = vrsqrt.pop %v31
  %v33 = vmul.f32 %v32, %v31
  %v34 = vmul.f32 %v33, %v32
  %v35 = vmul.f32 0.5, %v34
  %v36 = vsub.f32 1.5, %v35
  %v37 = vmul.f32 %v32, %v36
  %vm38 = vweird.f32 %v31
  %vm39 = vweird.f32 %v32
  %vm40 = vmor %vm38, %vm39
  %v41 = vsel %vm40, %v32, %v37
  %v42 = vmul.f32 %v30, %v41
  %v43 = vld [vmem:[%s1] sm:$0xff]
  %v44 = vld [vmem:[%s1 + $0x8] sm:$0xff]
  %v45 = vld [vmem:[%s1 + $0x10] sm:$0x1]
  %v46 = vperm.slane %v45, 0
  %v48 = vsel %vm18, %v42, 0
  %50 = vmatpush.msra.mxu0 0.0
  %51 = vmatpush.msra.mxu0 0.0
  %52 = vmatpush.msra.mxu0 0.0
  %53 = vmatpush.msra.mxu0 0.0
  %54 = vmatpush.msra.mxu0 0.0
  %55 = vmatpush.msra.mxu0 0.0
  %56 = vmatpush.msra.mxu0 0.0
  %57 = vmatpush.msra.mxu0 0.0
  %58 = vmatpush.msra.mxu0 0.0
  %59 = vmatpush.msra.mxu0 0.0
  %60 = vmatpush.msra.mxu0 0.0
  %61 = vmatpush.msra.mxu0 0.0
  %62 = vmatpush.msra.mxu0 0.0
  %63 = vmatpush.msra.mxu0 0.0
  %64 = vmatpush.msra.mxu0 %v44
  %65 = vmatpush.msra.mxu0 %v43
  %66 = vmatmul.f32.gmra.mxu0 %v48
  %v67 = vpop.f32.mrf.mxu0
  %v68 = vadd.f32 %v46, %v67
  %69 = vdwg.mxu0
  %v70 = vmax.f32 %v68, 0.0
  %v71 = vld [vmem:[%s2] sm:$0xff]
  %v72 = vld [vmem:[%s2 + $0x8] sm:$0xff]
  %v73 = vld [vmem:[%s2 + $0x10] sm:$0xff]
  %v74 = vld [vmem:[%s2 + $0x18] sm:$0xff]
  %v75 = vld [vmem:[%s2 + $0x20] sm:$0x1]
  %vm76 = vcmask 261120
  %v77 = vsel %vm76, %v70, 0.0
  %78 = vadd.xlane.f32.xlu0 %v77
  %v79 = vpop.xlane.xlu0 %78
  %v80 = vmul.f32 %v70, %v70
  %v81 = vsel %vm76, %v80, 0.0
  %82 = vadd.xlane.f32.xlu0 %v81
  %v83 = vpop.xlane.xlu0 %82
  %v84 = vmul.f32 %v79, 0.03125
  %v85 = vmul.f32 %v83, 0.03125
  %v86 = vmul.f32 %v84, %v84
  %v87 = vsub.f32 %v85, %v86
  %v88 = vsub.f32 %v70, %v84
  %v89 = vadd.f32 %v87, 1e-05
  %v90 = vrsqrt.pop %v89
  %v91 = vmul.f32 %v90, %v89
  %v92 = vmul.f32 %v91, %v90
  %v93 = vmul.f32 0.5, %v92
  %v94 = vsub.f32 1.5, %v93
  %v95 = vmul.f32 %v90, %v94
  %vm96 = vweird.f32 %v89
  %vm97 = vweird.f32 %v90
  %vm98 = vmor %vm96, %vm97
  %v99 = vsel %vm98, %v90, %v95
  %v100 = vmul.f32 %v88, %v99
  %v101 = vperm.slane %v75, 0
  %v103 = vsel %vm76, %v100, 0
  %105 = vmatpush.msra.mxu0 0.0
  %106 = vmatpush.msra.mxu0 0.0
  %107 = vmatpush.msra.mxu0 0.0
  %108 = vmatpush.msra.mxu0 0.0
  %109 = vmatpush.msra.mxu0 0.0
  %110 = vmatpush.msra.mxu0 0.0
  %111 = vmatpush.msra.mxu0 0.0
  %112 = vmatpush.msra.mxu0 0.0
  %113 = vmatpush.msra.mxu0 0.0
  %114 = vmatpush.msra.mxu0 0.0
  %115 = vmatpush.msra.mxu0 0.0
  %116 = vmatpush.msra.mxu0 0.0
  %117 = vmatpush.msra.mxu0 %v74
  %118 = vmatpush.msra.mxu0 %v73
  %119 = vmatpush.msra.mxu0 %v72
  %120 = vmatpush.msra.mxu0 %v71
  %121 = vmatmul.f32.gmra.mxu0 %v103
  %v122 = vpop.f32.mrf.mxu0
  %v123 = vadd.f32 %v101, %v122
  %124 = vdwg.mxu0
  %v125 = vmax.f32 %v123, 0.0
  %s126 = scalar_lea.vmem %s2, 40
  %v127 = vld [vmem:[%s126] sm:$0xff]
  %v128 = vld [vmem:[%s126 + $0x8] sm:$0xff]
  %v129 = vld [vmem:[%s126 + $0x10] sm:$0xff]
  %v130 = vld [vmem:[%s126 + $0x18] sm:$0xff]
  %v131 = vld [vmem:[%s126 + $0x20] sm:$0x1]
  %v132 = vsel %vm76, %v125, 0.0
  %133 = vadd.xlane.f32.xlu0 %v132
  %v134 = vpop.xlane.xlu0 %133
  %v135 = vmul.f32 %v125, %v125
  %v136 = vsel %vm76, %v135, 0.0
  %137 = vadd.xlane.f32.xlu0 %v136
  %v138 = vpop.xlane.xlu0 %137
  %v139 = vmul.f32 %v134, 0.03125
  %v140 = vmul.f32 %v138, 0.03125
  %v141 = vmul.f32 %v139, %v139
  %v142 = vsub.f32 %v140, %v141
  %v143 = vsub.f32 %v125, %v139
  %v144 = vadd.f32 %v142, 1e-05
  %v145 = vrsqrt.pop %v144
  %v146 = vmul.f32 %v145, %v144
  %v147 = vmul.f32 %v146, %v145
  %v148 = vmul.f32 0.5, %v147
  %v149 = vsub.f32 1.5, %v148
  %v150 = vmul.f32 %v145, %v149
  %vm151 = vweird.f32 %v144
  %vm152 = vweird.f32 %v145
  %vm153 = vmor %vm151, %vm152
  %v154 = vsel %vm153, %v145, %v150
  %v155 = vmul.f32 %v143, %v154
  %v156 = vperm.slane %v131, 0
  %v158 = vsel %vm76, %v155, 0
  %160 = vmatpush.msra.mxu0 0.0
  %161 = vmatpush.msra.mxu0 0.0
  %162 = vmatpush.msra.mxu0 0.0
  %163 = vmatpush.msra.mxu0 0.0
  %164 = vmatpush.msra.mxu0 0.0
  %165 = vmatpush.msra.mxu0 0.0
  %166 = vmatpush.msra.mxu0 0.0
  %167 = vmatpush.msra.mxu0 0.0
  %168 = vmatpush.msra.mxu0 0.0
  %169 = vmatpush.msra.mxu0 0.0
  %170 = vmatpush.msra.mxu0 0.0
  %171 = vmatpush.msra.mxu0 0.0
  %172 = vmatpush.msra.mxu0 %v130
  %173 = vmatpush.msra.mxu0 %v129
  %174 = vmatpush.msra.mxu0 %v128
  %175 = vmatpush.msra.mxu0 %v127
  %176 = vmatmul.f32.gmra.mxu0 %v158
  %v177 = vpop.f32.mrf.mxu0
  %v178 = vadd.f32 %v156, %v177
  %179 = vdwg.mxu0
  %v180 = vmax.f32 %v178, 0.0
  %s181 = scalar_lea.vmem %s2, 80
  %v182 = vld [vmem:[%s181] sm:$0xff]
  %v183 = vld [vmem:[%s181 + $0x8] sm:$0xff]
  %v184 = vld [vmem:[%s181 + $0x10] sm:$0xff]
  %v185 = vld [vmem:[%s181 + $0x18] sm:$0xff]
  %v186 = vld [vmem:[%s181 + $0x20] sm:$0x1]
  %v187 = vsel %vm76, %v180, 0.0
  %188 = vadd.xlane.f32.xlu0 %v187
  %v189 = vpop.xlane.xlu0 %188
  %v190 = vmul.f32 %v180, %v180
  %v191 = vsel %vm76, %v190, 0.0
  %192 = vadd.xlane.f32.xlu0 %v191
  %v193 = vpop.xlane.xlu0 %192
  %v194 = vmul.f32 %v189, 0.03125
  %v195 = vmul.f32 %v193, 0.03125
  %v196 = vmul.f32 %v194, %v194
  %v197 = vsub.f32 %v195, %v196
  %v198 = vsub.f32 %v180, %v194
  %v199 = vadd.f32 %v197, 1e-05
  %v200 = vrsqrt.pop %v199
  %v201 = vmul.f32 %v200, %v199
  %v202 = vmul.f32 %v201, %v200
  %v203 = vmul.f32 0.5, %v202
  %v204 = vsub.f32 1.5, %v203
  %v205 = vmul.f32 %v200, %v204
  %vm206 = vweird.f32 %v199
  %vm207 = vweird.f32 %v200
  %vm208 = vmor %vm206, %vm207
  %v209 = vsel %vm208, %v200, %v205
  %v210 = vmul.f32 %v198, %v209
  %v211 = vperm.slane %v186, 0
  %v213 = vsel %vm76, %v210, 0
  %215 = vmatpush.msra.mxu0 0.0
  %216 = vmatpush.msra.mxu0 0.0
  %217 = vmatpush.msra.mxu0 0.0
  %218 = vmatpush.msra.mxu0 0.0
  %219 = vmatpush.msra.mxu0 0.0
  %220 = vmatpush.msra.mxu0 0.0
  %221 = vmatpush.msra.mxu0 0.0
  %222 = vmatpush.msra.mxu0 0.0
  %223 = vmatpush.msra.mxu0 0.0
  %224 = vmatpush.msra.mxu0 0.0
  %225 = vmatpush.msra.mxu0 0.0
  %226 = vmatpush.msra.mxu0 0.0
  %227 = vmatpush.msra.mxu0 %v185
  %228 = vmatpush.msra.mxu0 %v184
  %229 = vmatpush.msra.mxu0 %v183
  %230 = vmatpush.msra.mxu0 %v182
  %231 = vmatmul.f32.gmra.mxu0 %v213
  %v232 = vpop.f32.mrf.mxu0
  %v233 = vadd.f32 %v211, %v232
  %234 = vdwg.mxu0
  %v235 = vmax.f32 %v233, 0.0
  %s236 = scalar_lea.vmem %s2, 120
  %v237 = vld [vmem:[%s236] sm:$0xff]
  %v238 = vld [vmem:[%s236 + $0x8] sm:$0xff]
  %v239 = vld [vmem:[%s236 + $0x10] sm:$0xff]
  %v240 = vld [vmem:[%s236 + $0x18] sm:$0xff]
  %v241 = vld [vmem:[%s236 + $0x20] sm:$0x1]
  %v242 = vsel %vm76, %v235, 0.0
  %243 = vadd.xlane.f32.xlu0 %v242
  %v244 = vpop.xlane.xlu0 %243
  %v245 = vmul.f32 %v235, %v235
  %v246 = vsel %vm76, %v245, 0.0
  %247 = vadd.xlane.f32.xlu0 %v246
  %v248 = vpop.xlane.xlu0 %247
  %v249 = vmul.f32 %v244, 0.03125
  %v250 = vmul.f32 %v248, 0.03125
  %v251 = vmul.f32 %v249, %v249
  %v252 = vsub.f32 %v250, %v251
  %v253 = vsub.f32 %v235, %v249
  %v254 = vadd.f32 %v252, 1e-05
  %v255 = vrsqrt.pop %v254
  %v256 = vmul.f32 %v255, %v254
  %v257 = vmul.f32 %v256, %v255
  %v258 = vmul.f32 0.5, %v257
  %v259 = vsub.f32 1.5, %v258
  %v260 = vmul.f32 %v255, %v259
  %vm261 = vweird.f32 %v254
  %vm262 = vweird.f32 %v255
  %vm263 = vmor %vm261, %vm262
  %v264 = vsel %vm263, %v255, %v260
  %v265 = vmul.f32 %v253, %v264
  %v266 = vperm.slane %v241, 0
  %v268 = vsel %vm76, %v265, 0
  %270 = vmatpush.msra.mxu0 0.0
  %271 = vmatpush.msra.mxu0 0.0
  %272 = vmatpush.msra.mxu0 0.0
  %273 = vmatpush.msra.mxu0 0.0
  %274 = vmatpush.msra.mxu0 0.0
  %275 = vmatpush.msra.mxu0 0.0
  %276 = vmatpush.msra.mxu0 0.0
  %277 = vmatpush.msra.mxu0 0.0
  %278 = vmatpush.msra.mxu0 0.0
  %279 = vmatpush.msra.mxu0 0.0
  %280 = vmatpush.msra.mxu0 0.0
  %281 = vmatpush.msra.mxu0 0.0
  %282 = vmatpush.msra.mxu0 %v240
  %283 = vmatpush.msra.mxu0 %v239
  %284 = vmatpush.msra.mxu0 %v238
  %285 = vmatpush.msra.mxu0 %v237
  %286 = vmatmul.f32.gmra.mxu0 %v268
  %v287 = vpop.f32.mrf.mxu0
  %v288 = vadd.f32 %v266, %v287
  %289 = vdwg.mxu0
  %v290 = vmax.f32 %v288, 0.0
  %s291 = scalar_lea.vmem %s2, 160
  %v292 = vld [vmem:[%s291] sm:$0xff]
  %v293 = vld [vmem:[%s291 + $0x8] sm:$0xff]
  %v294 = vld [vmem:[%s291 + $0x10] sm:$0xff]
  %v295 = vld [vmem:[%s291 + $0x18] sm:$0xff]
  %v296 = vld [vmem:[%s291 + $0x20] sm:$0x1]
  %v297 = vsel %vm76, %v290, 0.0
  %298 = vadd.xlane.f32.xlu0 %v297
  %v299 = vpop.xlane.xlu0 %298
  %v300 = vmul.f32 %v290, %v290
  %v301 = vsel %vm76, %v300, 0.0
  %302 = vadd.xlane.f32.xlu0 %v301
  %v303 = vpop.xlane.xlu0 %302
  %v304 = vmul.f32 %v299, 0.03125
  %v305 = vmul.f32 %v303, 0.03125
  %v306 = vmul.f32 %v304, %v304
  %v307 = vsub.f32 %v305, %v306
  %v308 = vsub.f32 %v290, %v304
  %v309 = vadd.f32 %v307, 1e-05
  %v310 = vrsqrt.pop %v309
  %v311 = vmul.f32 %v310, %v309
  %v312 = vmul.f32 %v311, %v310
  %v313 = vmul.f32 0.5, %v312
  %v314 = vsub.f32 1.5, %v313
  %v315 = vmul.f32 %v310, %v314
  %vm316 = vweird.f32 %v309
  %vm317 = vweird.f32 %v310
  %vm318 = vmor %vm316, %vm317
  %v319 = vsel %vm318, %v310, %v315
  %v320 = vmul.f32 %v308, %v319
  %v321 = vperm.slane %v296, 0
  %v323 = vsel %vm76, %v320, 0
  %325 = vmatpush.msra.mxu0 0.0
  %326 = vmatpush.msra.mxu0 0.0
  %327 = vmatpush.msra.mxu0 0.0
  %328 = vmatpush.msra.mxu0 0.0
  %329 = vmatpush.msra.mxu0 0.0
  %330 = vmatpush.msra.mxu0 0.0
  %331 = vmatpush.msra.mxu0 0.0
  %332 = vmatpush.msra.mxu0 0.0
  %333 = vmatpush.msra.mxu0 0.0
  %334 = vmatpush.msra.mxu0 0.0
  %335 = vmatpush.msra.mxu0 0.0
  %336 = vmatpush.msra.mxu0 0.0
  %337 = vmatpush.msra.mxu0 %v295
  %338 = vmatpush.msra.mxu0 %v294
  %339 = vmatpush.msra.mxu0 %v293
  %340 = vmatpush.msra.mxu0 %v292
  %341 = vmatmul.f32.gmra.mxu0 %v323
  %v342 = vpop.f32.mrf.mxu0
  %v343 = vadd.f32 %v321, %v342
  %344 = vdwg.mxu0
  %v345 = vmax.f32 %v343, 0.0
  %v346 = vld [vmem:[%s3] sm:$0xff]
  %v347 = vld [vmem:[%s3 + $0x8] sm:$0xff]
  %v348 = vld [vmem:[%s3 + $0x10] sm:$0xff]
  %v349 = vld [vmem:[%s3 + $0x18] sm:$0xff]
  %v350 = vld [vmem:[%s3 + $0x20] sm:$0x1]
  %v351 = vperm.slane %v350, 0
  %v353 = vsel %vm76, %v345, 0
  %355 = vmatpush.msra.mxu0 0.0
  %356 = vmatpush.msra.mxu0 0.0
  %357 = vmatpush.msra.mxu0 0.0
  %358 = vmatpush.msra.mxu0 0.0
  %359 = vmatpush.msra.mxu0 0.0
  %360 = vmatpush.msra.mxu0 0.0
  %361 = vmatpush.msra.mxu0 0.0
  %362 = vmatpush.msra.mxu0 0.0
  %363 = vmatpush.msra.mxu0 0.0
  %364 = vmatpush.msra.mxu0 0.0
  %365 = vmatpush.msra.mxu0 0.0
  %366 = vmatpush.msra.mxu0 0.0
  %367 = vmatpush.msra.mxu0 %v349
  %368 = vmatpush.msra.mxu0 %v348
  %369 = vmatpush.msra.mxu0 %v347
  %370 = vmatpush.msra.mxu0 %v346
  %371 = vmatmul.f32.gmra.mxu0 %v353
  %v372 = vpop.f32.mrf.mxu0
  %v373 = vadd.f32 %v351, %v372
  %374 = vdwg.mxu0
  %375 = vst [vmem:[%s4] sm:$0xff] %v373
  // Predicated region
  $region18: #{custom_deeper_forward.1} parent=0 // pred_check
    _
  $region19: #{custom_deeper_forward.1} parent=0 // pred_check_branch
    %377 = sbr.rel (0) target = $region21
  $region20: #{custom_deeper_forward.1} parent=0 // pred_region
    _
  $region21: #{custom_deeper_forward.1} parent=0 // pred_fallthru
    _
  // Predicated region
  $region22: #{custom_deeper_forward.1} parent=0 // pred_check
    _
  $region23: #{custom_deeper_forward.1} parent=0 // pred_check_branch
    %379 = sbr.rel (0) target = $region25
  $region24: #{custom_deeper_forward.1} parent=0 // pred_region
    _
  $region25: #{custom_deeper_forward.1} parent=0 // pred_fallthru
    _

</llo_original>
